<compile_context>
chip_gen: v7x
topology: tpu7x:2x2x1
jax: 0.10.0
libtpu: 0.0.40
codegen_flags: <defaults>
</compile_context>

<pallas_src>
import jax
import jax.numpy as jnp
from jax.experimental import pallas as pl
from jax.experimental.pallas import tpu as pltpu


def _make_fold_kernel(inv_m: float):
    def kernel(x_ref, w_out_ref, w_aux_ref, b_out_ref, b_aux_ref,
               o_out_ref, o_aux_ref):
        # x_ref:      (B, D)
        # w_*_ref:    (M, D, H)  stacked per-model weights
        # b_*_ref:    (M, 1, H)  stacked per-model biases
        # o_*_ref:    (B, H)     ensemble-mean prediction per dict key
        x = x_ref[...]

        # Ensemble mean over the model axis: (M-1) VPU adds + one scale per
        # head — rides in the otherwise-idle VALU/epilogue slots.
        w_out_mean = jnp.sum(w_out_ref[...], axis=0) * inv_m      # (D, H)
        w_aux_mean = jnp.sum(w_aux_ref[...], axis=0) * inv_m      # (D, H)
        b_out_mean = jnp.sum(b_out_ref[...], axis=0) * inv_m      # (1, H)
        b_aux_mean = jnp.sum(b_aux_ref[...], axis=0) * inv_m      # (1, H)

        # One MXU matmul per head at K = D (not M*D); lane-dense 128-wide
        # f32 stores straight to the two dict outputs.
        o_out_ref[...] = (
            jnp.dot(x, w_out_mean, preferred_element_type=jnp.float32)
            + b_out_mean
        ).astype(o_out_ref.dtype)
        o_aux_ref[...] = (
            jnp.dot(x, w_aux_mean, preferred_element_type=jnp.float32)
            + b_aux_mean
        ).astype(o_aux_ref.dtype)

    return kernel


def fold_model(x, w_out, b_out, w_aux, b_aux):
    """Pallas implementation of FoldModel.forward with linear sub-models."""
    M, D, H = w_out.shape
    B = x.shape[0]
    itemsize = jnp.dtype(x.dtype).itemsize

    # Advisory cost hint: 2 matmuls (K=D) + model-axis weight/bias reduction.
    flops = 2 * (2 * B * D * H) + 2 * (M - 1) * D * H + 2 * (M - 1) * H
    bytes_accessed = itemsize * (
        B * D + 2 * M * D * H + 2 * M * H + 2 * B * H
    )
    vmem = pltpu.MemorySpace.VMEM

    o_out, o_aux = pl.pallas_call(
        _make_fold_kernel(1.0 / M),
        out_shape=(
            jax.ShapeDtypeStruct((B, H), x.dtype),
            jax.ShapeDtypeStruct((B, H), x.dtype),
        ),
        in_specs=[
            pl.BlockSpec(memory_space=vmem),   # x      (B, D)
            pl.BlockSpec(memory_space=vmem),   # w_out  (M, D, H)
            pl.BlockSpec(memory_space=vmem),   # w_aux  (M, D, H)
            pl.BlockSpec(memory_space=vmem),   # b_out  (M, 1, H)
            pl.BlockSpec(memory_space=vmem),   # b_aux  (M, 1, H)
        ],
        out_specs=(
            pl.BlockSpec(memory_space=vmem),   # out (B, H)
            pl.BlockSpec(memory_space=vmem),   # aux (B, H)
        ),
        cost_estimate=pl.CostEstimate(
            flops=flops, transcendentals=0, bytes_accessed=bytes_accessed
        ),
    )(x, w_out, w_aux, b_out, b_aux)

    return {"out": o_out, "aux": o_aux}


if __name__ == "__main__":
    M, B, D, H = 3, 8, 128, 128

    key = jax.random.PRNGKey(0)
    kx, kw1, kb1, kw2, kb2 = jax.random.split(key, 5)
    x = jax.random.normal(kx, (B, D), dtype=jnp.float32)
    w_out = jax.random.normal(kw1, (M, D, H), dtype=jnp.float32) * 0.05
    b_out = jax.random.normal(kb1, (M, 1, H), dtype=jnp.float32) * 0.1
    w_aux = jax.random.normal(kw2, (M, D, H), dtype=jnp.float32) * 0.05
    b_aux = jax.random.normal(kb2, (M, 1, H), dtype=jnp.float32) * 0.1

    res = jax.jit(fold_model)(x, w_out, b_out, w_aux, b_aux)
    jax.block_until_ready(res)

    # pure-JAX reference: ensemble mean over models for each dict key
    ref_out = jnp.mean(jnp.einsum("bd,mdh->mbh", x, w_out) + b_out, axis=0)
    ref_aux = jnp.mean(jnp.einsum("bd,mdh->mbh", x, w_aux) + b_aux, axis=0)

    assert res["out"].shape == (B, H) and res["aux"].shape == (B, H)
    assert jnp.allclose(res["out"], ref_out, atol=5e-4, rtol=5e-4)
    assert jnp.allclose(res["aux"], ref_aux, atol=5e-4, rtol=5e-4)
    print("KERNEL_OK")
</pallas_src>

<mosaic_0001>
module attributes {stable_mosaic.version = 11 : i64} {
  func.func @kernel(%arg0: memref<8x128xf32, #tpu.memory_space<vmem>>, %arg1: memref<3x128x128xf32, #tpu.memory_space<vmem>>, %arg2: memref<3x128x128xf32, #tpu.memory_space<vmem>>, %arg3: memref<3x1x128xf32, #tpu.memory_space<vmem>>, %arg4: memref<3x1x128xf32, #tpu.memory_space<vmem>>, %arg5: memref<8x128xf32, #tpu.memory_space<vmem>>, %arg6: memref<8x128xf32, #tpu.memory_space<vmem>>) attributes {dimension_semantics = [], scalar_prefetch = 0 : i64, scratch_operands = 0 : i64, tpu.core_type = #tpu.core_type<tc>} {
    %c0 = arith.constant 0 : index
    %c0_0 = arith.constant 0 : index
    %0 = vector.load %arg0[%c0, %c0_0] : memref<8x128xf32, #tpu.memory_space<vmem>>, vector<8x128xf32>
    %c0_1 = arith.constant 0 : index
    %c0_2 = arith.constant 0 : index
    %c0_3 = arith.constant 0 : index
    %1 = vector.load %arg1[%c0_1, %c0_2, %c0_3] : memref<3x128x128xf32, #tpu.memory_space<vmem>>, vector<3x128x128xf32>
    %cst = arith.constant dense<0.000000e+00> : vector<128x128xf32>
    %2 = vector.multi_reduction <add>, %1, %cst [0] : vector<3x128x128xf32> to vector<128x128xf32>
    %cst_4 = arith.constant 0.333333343 : f32
    %3 = vector.broadcast %cst_4 : f32 to vector<128x128xf32>
    %4 = arith.mulf %2, %3 : vector<128x128xf32>
    %c0_5 = arith.constant 0 : index
    %c0_6 = arith.constant 0 : index
    %c0_7 = arith.constant 0 : index
    %5 = vector.load %arg2[%c0_5, %c0_6, %c0_7] : memref<3x128x128xf32, #tpu.memory_space<vmem>>, vector<3x128x128xf32>
    %cst_8 = arith.constant dense<0.000000e+00> : vector<128x128xf32>
    %6 = vector.multi_reduction <add>, %5, %cst_8 [0] : vector<3x128x128xf32> to vector<128x128xf32>
    %cst_9 = arith.constant 0.333333343 : f32
    %7 = vector.broadcast %cst_9 : f32 to vector<128x128xf32>
    %8 = arith.mulf %6, %7 : vector<128x128xf32>
    %c0_10 = arith.constant 0 : index
    %c0_11 = arith.constant 0 : index
    %c0_12 = arith.constant 0 : index
    %9 = vector.load %arg3[%c0_10, %c0_11, %c0_12] : memref<3x1x128xf32, #tpu.memory_space<vmem>>, vector<3x1x128xf32>
    %cst_13 = arith.constant dense<0.000000e+00> : vector<1x128xf32>
    %10 = vector.multi_reduction <add>, %9, %cst_13 [0] : vector<3x1x128xf32> to vector<1x128xf32>
    %cst_14 = arith.constant 0.333333343 : f32
    %11 = vector.broadcast %cst_14 : f32 to vector<1x128xf32>
    %12 = arith.mulf %10, %11 : vector<1x128xf32>
    %c0_15 = arith.constant 0 : index
    %c0_16 = arith.constant 0 : index
    %c0_17 = arith.constant 0 : index
    %13 = vector.load %arg4[%c0_15, %c0_16, %c0_17] : memref<3x1x128xf32, #tpu.memory_space<vmem>>, vector<3x1x128xf32>
    %cst_18 = arith.constant dense<0.000000e+00> : vector<1x128xf32>
    %14 = vector.multi_reduction <add>, %13, %cst_18 [0] : vector<3x1x128xf32> to vector<1x128xf32>
    %cst_19 = arith.constant 0.333333343 : f32
    %15 = vector.broadcast %cst_19 : f32 to vector<1x128xf32>
    %16 = arith.mulf %14, %15 : vector<1x128xf32>
    %cst_20 = arith.constant dense<0.000000e+00> : vector<8x128xf32>
    %17 = tpu.matmul %0, %4, %cst_20 {dimension_numbers = #tpu.dot_dimension_numbers<[1], [0], [0], [1], [0, 0, 1, 1], [], []>} : vector<8x128xf32>, vector<128x128xf32>, vector<8x128xf32> -> vector<8x128xf32>
    %18 = vector.broadcast %12 : vector<1x128xf32> to vector<8x128xf32>
    %19 = arith.addf %17, %18 : vector<8x128xf32>
    %c0_21 = arith.constant 0 : index
    %c0_22 = arith.constant 0 : index
    %20 = vector.load %arg5[%c0_21, %c0_22] : memref<8x128xf32, #tpu.memory_space<vmem>>, vector<8x128xf32>
    tpu.vector_store %arg5[%c0_21, %c0_22], %19 {strides = array<i32>} : memref<8x128xf32, #tpu.memory_space<vmem>>, vector<8x128xf32>,
    %cst_23 = arith.constant dense<0.000000e+00> : vector<8x128xf32>
    %21 = tpu.matmul %0, %8, %cst_23 {dimension_numbers = #tpu.dot_dimension_numbers<[1], [0], [0], [1], [0, 0, 1, 1], [], []>} : vector<8x128xf32>, vector<128x128xf32>, vector<8x128xf32> -> vector<8x128xf32>
    %22 = vector.broadcast %16 : vector<1x128xf32> to vector<8x128xf32>
    %23 = arith.addf %21, %22 : vector<8x128xf32>
    %c0_24 = arith.constant 0 : index
    %c0_25 = arith.constant 0 : index
    %24 = vector.load %arg6[%c0_24, %c0_25] : memref<8x128xf32, #tpu.memory_space<vmem>>, vector<8x128xf32>
    tpu.vector_store %arg6[%c0_24, %c0_25], %23 {strides = array<i32>} : memref<8x128xf32, #tpu.memory_space<vmem>>, vector<8x128xf32>,
    return
  }
}

</mosaic_0001>

<llo_original>
// kernel: fold_model.1
$region0: #{fold_model.1}
  #allocation0 [shape = 'u32[]', space=smem, size = 0x4, offset = 0x4, fixed_abs, tag = 'smem constant byte address 0x4 - core index']
  #allocation1 [shape = 'u32[144,128]{1,0:T(1,128)}', space=vmem, size = 0x12000, scoped, tag = 'internal scratch']
  %s0 = inlined_call_operand.hbm [shape: f32[8,128], index: 0, kind: input, shape index: {}]
  %s1 = inlined_call_operand.hbm [shape: f32[3,128,128], index: 1, kind: input, shape index: {}]
  %s2 = inlined_call_operand.hbm [shape: f32[3,128,128], index: 2, kind: input, shape index: {}]
  %s3 = inlined_call_operand.vmem [shape: f32[3,1,128], index: 3, kind: input, shape index: {}]
  %s4 = inlined_call_operand.vmem [shape: f32[3,1,128], index: 4, kind: input, shape index: {}]
  %s5 = inlined_call_operand.hbm [shape: f32[8,128], index: 5, kind: output, shape index: {0}]
  %s6 = inlined_call_operand.hbm [shape: f32[8,128], index: 6, kind: output, shape index: {1}]
  %7 = xla_tuple %s5, %s6
  %s8 = sld [smem:[#allocation0]]
  $region50: #{fold_model.1} parent=0
    _
  %s10 = ssub.s32 1, %s8
  %s11 = scalar_select 0, %s10, %s8
  $region1: #{fold_model.1} parent=0
    #allocation2 [shape = 'u8[4096]{0}', space=vmem, size = 0x1000, scoped, tag = 'input window, operand 0, single buffered']
    #allocation3 [shape = 's32[1]{0}', space=sflag, size = 0x4, scoped, tag = 'scoped memory for fold_model.1']
    #allocation4 [shape = 's32[1]{0}', space=sflag, size = 0x4, scoped, tag = 'scoped memory for fold_model.1']
    #allocation5 [shape = 'u8[196608]{0}', space=vmem, size = 0x30000, scoped, tag = 'input window, operand 1, single buffered']
    #allocation6 [shape = 's32[1]{0}', space=sflag, size = 0x4, scoped, tag = 'scoped memory for fold_model.1']
    #allocation7 [shape = 'u8[196608]{0}', space=vmem, size = 0x30000, scoped, tag = 'input window, operand 2, single buffered']
    #allocation8 [shape = 'u8[4096]{0}', space=vmem, size = 0x1000, scoped, tag = 'output window, operand 0, single buffered']
    #allocation9 [shape = 'u8[4096]{0}', space=vmem, size = 0x1000, scoped, tag = 'output window, operand 1, single buffered']
    #allocation10 [shape = 's32[1]{0}', space=sflag, size = 0x4, scoped, tag = 'scoped memory for fold_model.1']
    %12 = vsyncpa [#allocation3], 0
    %13 = vsyncpa [#allocation6], 0
    %14 = vsyncpa [#allocation4], 0
    %15 = vsyncpa [#allocation10], 0
    // Predicated region
    $region2: #{fold_model.1} parent=1 // pred_check
      _
    $region3: #{fold_model.1} parent=1 // pred_check_branch
      %17 = sbr.rel (0) target = $region5
    $region4: #{fold_model.1} parent=1 // pred_region
      %s19 = ssub.s32 128, 128
      %20 = vsyncadd [#allocation3], %s19
      %s22 = sshll.u32 [#allocation2], 4
      %s23 = int_to_ptr.vmem [resolvable:$true] %s22
      %25 = dma.hbm_to_vmem [thread:$0]  %s0, 128, %s23, [#allocation3]
    $region5: #{fold_model.1} parent=1 // pred_fallthru
      _
    // Predicated region
    $region6: #{fold_model.1} parent=1 // pred_check
      _
    $region7: #{fold_model.1} parent=1 // pred_check_branch
      %27 = sbr.rel (0) target = $region9
    $region8: #{fold_model.1} parent=1 // pred_region
      %s29 = ssub.s32 6144, 6144
      %30 = vsyncadd [#allocation6], %s29
      %s31 = sshll.u32 [#allocation5], 4
      %s32 = int_to_ptr.vmem [resolvable:$true] %s31
      %37 = dma.hbm_to_vmem [thread:$0]  %s1, 6144, %s32, [#allocation6], 128, 128, 8
    $region9: #{fold_model.1} parent=1 // pred_fallthru
      _
    // Predicated region
    $region10: #{fold_model.1} parent=1 // pred_check
      _
    $region11: #{fold_model.1} parent=1 // pred_check_branch
      %39 = sbr.rel (0) target = $region13
    $region12: #{fold_model.1} parent=1 // pred_region
      %s41 = ssub.s32 6144, 6144
      %42 = vsyncadd [#allocation6], %s41
      %s43 = sshll.u32 [#allocation7], 4
      %s44 = int_to_ptr.vmem [resolvable:$true] %s43
      %49 = dma.hbm_to_vmem [thread:$0]  %s2, 6144, %s44, [#allocation6], 128, 128, 8
    $region13: #{fold_model.1} parent=1 // pred_fallthru
      _
    // Predicated region
    $region14: #{fold_model.1} parent=1 // pred_check
      _
    $region15: #{fold_model.1} parent=1 // pred_check_branch
      %51 = sbr.rel (0) target = $region17
    $region16: #{fold_model.1} parent=1 // pred_region
      _
    $region17: #{fold_model.1} parent=1 // pred_fallthru
      _
    // Predicated region
    $region18: #{fold_model.1} parent=1 // pred_check
      _
    $region19: #{fold_model.1} parent=1 // pred_check_branch
      %53 = sbr.rel (0) target = $region21
    $region20: #{fold_model.1} parent=1 // pred_region
      _
    $region21: #{fold_model.1} parent=1 // pred_fallthru
      _
    // Predicated region
    $region22: #{fold_model.1} parent=1 // pred_check
      _
    $region23: #{fold_model.1} parent=1 // pred_check_branch
      %55 = sbr.rel (0) target = $region25
    $region24: #{fold_model.1} parent=1 // pred_region
      %56 = dma.done [#allocation3], 128
    $region25: #{fold_model.1} parent=1 // pred_fallthru
      _
    // Predicated region
    $region26: #{fold_model.1} parent=1 // pred_check
      _
    $region27: #{fold_model.1} parent=1 // pred_check_branch
      %58 = sbr.rel (0) target = $region29
    $region28: #{fold_model.1} parent=1 // pred_region
      %59 = dma.done [#allocation6], 6144
    $region29: #{fold_model.1} parent=1 // pred_fallthru
      _
    // Predicated region
    $region30: #{fold_model.1} parent=1 // pred_check
      _
    $region31: #{fold_model.1} parent=1 // pred_check_branch
      %61 = sbr.rel (0) target = $region33
    $region32: #{fold_model.1} parent=1 // pred_region
      %62 = dma.done [#allocation6], 6144
    $region33: #{fold_model.1} parent=1 // pred_fallthru
      _
    %v63 = vld [vmem:[#allocation2] sm:$0xff]
    %v64 = vld [vmem:[#allocation5] sm:$0xff]
    %v65 = vld [vmem:[#allocation5 + $0x8] sm:$0xff]
    %v66 = vld [vmem:[#allocation5 + $0x10] sm:$0xff]
    %v67 = vld [vmem:[#allocation5 + $0x18] sm:$0xff]
    %v68 = vld [vmem:[#allocation5 + $0x20] sm:$0xff]
    %v69 = vld [vmem:[#allocation5 + $0x28] sm:$0xff]
    %v70 = vld [vmem:[#allocation5 + $0x30] sm:$0xff]
    %v71 = vld [vmem:[#allocation5 + $0x38] sm:$0xff]
    %v72 = vld [vmem:[#allocation5 + $0x40] sm:$0xff]
    %v73 = vld [vmem:[#allocation5 + $0x48] sm:$0xff]
    %v74 = vld [vmem:[#allocation5 + $0x50] sm:$0xff]
    %v75 = vld [vmem:[#allocation5 + $0x58] sm:$0xff]
    %v76 = vld [vmem:[#allocation5 + $0x60] sm:$0xff]
    %v77 = vld [vmem:[#allocation5 + $0x68] sm:$0xff]
    %v78 = vld [vmem:[#allocation5 + $0x70] sm:$0xff]
    %v79 = vld [vmem:[#allocation5 + $0x78] sm:$0xff]
    %v80 = vld [vmem:[#allocation5 + $0x80] sm:$0xff]
    %v81 = vld [vmem:[#allocation5 + $0x88] sm:$0xff]
    %v82 = vld [vmem:[#allocation5 + $0x90] sm:$0xff]
    %v83 = vld [vmem:[#allocation5 + $0x98] sm:$0xff]
    %v84 = vld [vmem:[#allocation5 + $0xa0] sm:$0xff]
    %v85 = vld [vmem:[#allocation5 + $0xa8] sm:$0xff]
    %v86 = vld [vmem:[#allocation5 + $0xb0] sm:$0xff]
    %v87 = vld [vmem:[#allocation5 + $0xb8] sm:$0xff]
    %v88 = vld [vmem:[#allocation5 + $0xc0] sm:$0xff]
    %v89 = vld [vmem:[#allocation5 + $0xc8] sm:$0xff]
    %v90 = vld [vmem:[#allocation5 + $0xd0] sm:$0xff]
    %v91 = vld [vmem:[#allocation5 + $0xd8] sm:$0xff]
    %v92 = vld [vmem:[#allocation5 + $0xe0] sm:$0xff]
    %v93 = vld [vmem:[#allocation5 + $0xe8] sm:$0xff]
    %v94 = vld [vmem:[#allocation5 + $0xf0] sm:$0xff]
    %v95 = vld [vmem:[#allocation5 + $0xf8] sm:$0xff]
    %v96 = vld [vmem:[#allocation5 + $0x100] sm:$0xff]
    %v97 = vld [vmem:[#allocation5 + $0x108] sm:$0xff]
    %v98 = vld [vmem:[#allocation5 + $0x110] sm:$0xff]
    %v99 = vld [vmem:[#allocation5 + $0x118] sm:$0xff]
    %v100 = vld [vmem:[#allocation5 + $0x120] sm:$0xff]
    %v101 = vld [vmem:[#allocation5 + $0x128] sm:$0xff]
    %v102 = vld [vmem:[#allocation5 + $0x130] sm:$0xff]
    %v103 = vld [vmem:[#allocation5 + $0x138] sm:$0xff]
    %v104 = vld [vmem:[#allocation5 + $0x140] sm:$0xff]
    %v105 = vld [vmem:[#allocation5 + $0x148] sm:$0xff]
    %v106 = vld [vmem:[#allocation5 + $0x150] sm:$0xff]
    %v107 = vld [vmem:[#allocation5 + $0x158] sm:$0xff]
    %v108 = vld [vmem:[#allocation5 + $0x160] sm:$0xff]
    %v109 = vld [vmem:[#allocation5 + $0x168] sm:$0xff]
    %v110 = vld [vmem:[#allocation5 + $0x170] sm:$0xff]
    %v111 = vld [vmem:[#allocation5 + $0x178] sm:$0xff]
    %v112 = vadd.f32 %v64, %v80
    %v113 = vadd.f32 %v112, %v96
    %v114 = vadd.f32 %v65, %v81
    %v115 = vadd.f32 %v114, %v97
    %v116 = vadd.f32 %v66, %v82
    %v117 = vadd.f32 %v116, %v98
    %v118 = vadd.f32 %v67, %v83
    %v119 = vadd.f32 %v118, %v99
    %v120 = vadd.f32 %v68, %v84
    %v121 = vadd.f32 %v120, %v100
    %v122 = vadd.f32 %v69, %v85
    %v123 = vadd.f32 %v122, %v101
    %v124 = vadd.f32 %v70, %v86
    %v125 = vadd.f32 %v124, %v102
    %v126 = vadd.f32 %v71, %v87
    %v127 = vadd.f32 %v126, %v103
    %v128 = vadd.f32 %v72, %v88
    %v129 = vadd.f32 %v128, %v104
    %v130 = vadd.f32 %v73, %v89
    %v131 = vadd.f32 %v130, %v105
    %v132 = vadd.f32 %v74, %v90
    %v133 = vadd.f32 %v132, %v106
    %v134 = vadd.f32 %v75, %v91
    %v135 = vadd.f32 %v134, %v107
    %v136 = vadd.f32 %v76, %v92
    %v137 = vadd.f32 %v136, %v108
    %v138 = vadd.f32 %v77, %v93
    %v139 = vadd.f32 %v138, %v109
    %v140 = vadd.f32 %v78, %v94
    %v141 = vadd.f32 %v140, %v110
    %v142 = vadd.f32 %v79, %v95
    %v143 = vadd.f32 %v142, %v111
    %v144 = vmul.f32 %v113, 0.33333334
    %v145 = vmul.f32 %v115, 0.33333334
    %v146 = vmul.f32 %v117, 0.33333334
    %v147 = vmul.f32 %v119, 0.33333334
    %v148 = vmul.f32 %v121, 0.33333334
    %v149 = vmul.f32 %v123, 0.33333334
    %v150 = vmul.f32 %v125, 0.33333334
    %v151 = vmul.f32 %v127, 0.33333334
    %v152 = vmul.f32 %v129, 0.33333334
    %v153 = vmul.f32 %v131, 0.33333334
    %v154 = vmul.f32 %v133, 0.33333334
    %v155 = vmul.f32 %v135, 0.33333334
    %v156 = vmul.f32 %v137, 0.33333334
    %v157 = vmul.f32 %v139, 0.33333334
    %v158 = vmul.f32 %v141, 0.33333334
    %v159 = vmul.f32 %v143, 0.33333334
    %v160 = vld [vmem:[#allocation7] sm:$0xff]
    %v161 = vld [vmem:[#allocation7 + $0x8] sm:$0xff]
    %v162 = vld [vmem:[#allocation7 + $0x10] sm:$0xff]
    %v163 = vld [vmem:[#allocation7 + $0x18] sm:$0xff]
    %v164 = vld [vmem:[#allocation7 + $0x20] sm:$0xff]
    %v165 = vld [vmem:[#allocation7 + $0x28] sm:$0xff]
    %v166 = vld [vmem:[#allocation7 + $0x30] sm:$0xff]
    %v167 = vld [vmem:[#allocation7 + $0x38] sm:$0xff]
    %v168 = vld [vmem:[#allocation7 + $0x40] sm:$0xff]
    %v169 = vld [vmem:[#allocation7 + $0x48] sm:$0xff]
    %v170 = vld [vmem:[#allocation7 + $0x50] sm:$0xff]
    %v171 = vld [vmem:[#allocation7 + $0x58] sm:$0xff]
    %v172 = vld [vmem:[#allocation7 + $0x60] sm:$0xff]
    %v173 = vld [vmem:[#allocation7 + $0x68] sm:$0xff]
    %v174 = vld [vmem:[#allocation7 + $0x70] sm:$0xff]
    %v175 = vld [vmem:[#allocation7 + $0x78] sm:$0xff]
    %v176 = vld [vmem:[#allocation7 + $0x80] sm:$0xff]
    %v177 = vld [vmem:[#allocation7 + $0x88] sm:$0xff]
    %v178 = vld [vmem:[#allocation7 + $0x90] sm:$0xff]
    %v179 = vld [vmem:[#allocation7 + $0x98] sm:$0xff]
    %v180 = vld [vmem:[#allocation7 + $0xa0] sm:$0xff]
    %v181 = vld [vmem:[#allocation7 + $0xa8] sm:$0xff]
    %v182 = vld [vmem:[#allocation7 + $0xb0] sm:$0xff]
    %v183 = vld [vmem:[#allocation7 + $0xb8] sm:$0xff]
    %v184 = vld [vmem:[#allocation7 + $0xc0] sm:$0xff]
    %v185 = vld [vmem:[#allocation7 + $0xc8] sm:$0xff]
    %v186 = vld [vmem:[#allocation7 + $0xd0] sm:$0xff]
    %v187 = vld [vmem:[#allocation7 + $0xd8] sm:$0xff]
    %v188 = vld [vmem:[#allocation7 + $0xe0] sm:$0xff]
    %v189 = vld [vmem:[#allocation7 + $0xe8] sm:$0xff]
    %v190 = vld [vmem:[#allocation7 + $0xf0] sm:$0xff]
    %v191 = vld [vmem:[#allocation7 + $0xf8] sm:$0xff]
    %v192 = vld [vmem:[#allocation7 + $0x100] sm:$0xff]
    %v193 = vld [vmem:[#allocation7 + $0x108] sm:$0xff]
    %v194 = vld [vmem:[#allocation7 + $0x110] sm:$0xff]
    %v195 = vld [vmem:[#allocation7 + $0x118] sm:$0xff]
    %v196 = vld [vmem:[#allocation7 + $0x120] sm:$0xff]
    %v197 = vld [vmem:[#allocation7 + $0x128] sm:$0xff]
    %v198 = vld [vmem:[#allocation7 + $0x130] sm:$0xff]
    %v199 = vld [vmem:[#allocation7 + $0x138] sm:$0xff]
    %v200 = vld [vmem:[#allocation7 + $0x140] sm:$0xff]
    %v201 = vld [vmem:[#allocation7 + $0x148] sm:$0xff]
    %v202 = vld [vmem:[#allocation7 + $0x150] sm:$0xff]
    %v203 = vld [vmem:[#allocation7 + $0x158] sm:$0xff]
    %v204 = vld [vmem:[#allocation7 + $0x160] sm:$0xff]
    %v205 = vld [vmem:[#allocation7 + $0x168] sm:$0xff]
    %v206 = vld [vmem:[#allocation7 + $0x170] sm:$0xff]
    %v207 = vld [vmem:[#allocation7 + $0x178] sm:$0xff]
    %v208 = vadd.f32 %v160, %v176
    %v209 = vadd.f32 %v208, %v192
    %v210 = vadd.f32 %v161, %v177
    %v211 = vadd.f32 %v210, %v193
    %v212 = vadd.f32 %v162, %v178
    %v213 = vadd.f32 %v212, %v194
    %v214 = vadd.f32 %v163, %v179
    %v215 = vadd.f32 %v214, %v195
    %v216 = vadd.f32 %v164, %v180
    %v217 = vadd.f32 %v216, %v196
    %v218 = vadd.f32 %v165, %v181
    %v219 = vadd.f32 %v218, %v197
    %v220 = vadd.f32 %v166, %v182
    %v221 = vadd.f32 %v220, %v198
    %v222 = vadd.f32 %v167, %v183
    %v223 = vadd.f32 %v222, %v199
    %v224 = vadd.f32 %v168, %v184
    %v225 = vadd.f32 %v224, %v200
    %v226 = vadd.f32 %v169, %v185
    %v227 = vadd.f32 %v226, %v201
    %v228 = vadd.f32 %v170, %v186
    %v229 = vadd.f32 %v228, %v202
    %v230 = vadd.f32 %v171, %v187
    %v231 = vadd.f32 %v230, %v203
    %v232 = vadd.f32 %v172, %v188
    %v233 = vadd.f32 %v232, %v204
    %v234 = vadd.f32 %v173, %v189
    %v235 = vadd.f32 %v234, %v205
    %v236 = vadd.f32 %v174, %v190
    %v237 = vadd.f32 %v236, %v206
    %v238 = vadd.f32 %v175, %v191
    %v239 = vadd.f32 %v238, %v207
    %v240 = vmul.f32 %v209, 0.33333334
    %v241 = vmul.f32 %v211, 0.33333334
    %v242 = vmul.f32 %v213, 0.33333334
    %v243 = vmul.f32 %v215, 0.33333334
    %v244 = vmul.f32 %v217, 0.33333334
    %v245 = vmul.f32 %v219, 0.33333334
    %v246 = vmul.f32 %v221, 0.33333334
    %v247 = vmul.f32 %v223, 0.33333334
    %v248 = vmul.f32 %v225, 0.33333334
    %v249 = vmul.f32 %v227, 0.33333334
    %v250 = vmul.f32 %v229, 0.33333334
    %v251 = vmul.f32 %v231, 0.33333334
    %v252 = vmul.f32 %v233, 0.33333334
    %v253 = vmul.f32 %v235, 0.33333334
    %v254 = vmul.f32 %v237, 0.33333334
    %v255 = vmul.f32 %v239, 0.33333334
    %v256 = vld [vmem:[%s3] sm:$0x1]
    %v257 = vld [vmem:[%s3 + $0x1] sm:$0x1]
    %v258 = vld [vmem:[%s3 + $0x2] sm:$0x1]
    %vm259 = vcmask 1040384
    %v260 = vsel %vm259, %v256, 0.0
    %v261 = vsel %vm259, %v257, 0.0
    %v262 = vadd.f32 %v260, %v261
    %v263 = vsel %vm259, %v258, 0.0
    %v264 = vadd.f32 %v262, %v263
    %v265 = vmul.f32 %v264, 0.33333334
    %v266 = vld [vmem:[%s4] sm:$0x1]
    %v267 = vld [vmem:[%s4 + $0x1] sm:$0x1]
    %v268 = vld [vmem:[%s4 + $0x2] sm:$0x1]
    %v269 = vsel %vm259, %v266, 0.0
    %v270 = vsel %vm259, %v267, 0.0
    %v271 = vadd.f32 %v269, %v270
    %v272 = vsel %vm259, %v268, 0.0
    %v273 = vadd.f32 %v271, %v272
    %v274 = vmul.f32 %v273, 0.33333334
    %v275 = vlaneseq
    %v276 = vshrl.u32 %v275, 7
    %v277 = vsub.s32 0, %v276
    %v278 = vrot.slane %v265, %v277
    %279 = vmatprep.subr.mxu0 0.0
    %280 = vmatpush1.msra.mxu0 %v144
    %281 = vmatprep.subr.mxu0 0.0
    %282 = vmatpush1.msra.mxu0 %v145
    %283 = vmatprep.subr.mxu0 0.0
    %284 = vmatpush1.msra.mxu0 %v146
    %285 = vmatprep.subr.mxu0 0.0
    %286 = vmatpush1.msra.mxu0 %v147
    %287 = vmatprep.subr.mxu0 0.0
    %288 = vmatpush1.msra.mxu0 %v148
    %289 = vmatprep.subr.mxu0 0.0
    %290 = vmatpush1.msra.mxu0 %v149
    %291 = vmatprep.subr.mxu0 0.0
    %292 = vmatpush1.msra.mxu0 %v150
    %293 = vmatprep.subr.mxu0 0.0
    %294 = vmatpush1.msra.mxu0 %v151
    %295 = vmatprep.subr.mxu0 0.0
    %296 = vmatpush1.msra.mxu0 %v152
    %297 = vmatprep.subr.mxu0 0.0
    %298 = vmatpush1.msra.mxu0 %v153
    %299 = vmatprep.subr.mxu0 0.0
    %300 = vmatpush1.msra.mxu0 %v154
    %301 = vmatprep.subr.mxu0 0.0
    %302 = vmatpush1.msra.mxu0 %v155
    %303 = vmatprep.subr.mxu0 0.0
    %304 = vmatpush1.msra.mxu0 %v156
    %305 = vmatprep.subr.mxu0 0.0
    %306 = vmatpush1.msra.mxu0 %v157
    %307 = vmatprep.subr.mxu0 0.0
    %308 = vmatpush1.msra.mxu0 %v158
    %309 = vmatprep.subr.mxu0 0.0
    %310 = vmatpush1.msra.mxu0 %v159
    %311 = vmatprep.subr.mxu0 0.0
    %312 = vmatpush1.msra.mxu0 0.0
    %313 = vmatprep.subr.mxu0 0.0
    %314 = vmatpush1.msra.mxu0 0.0
    %315 = vmatprep.subr.mxu0 0.0
    %316 = vmatpush1.msra.mxu0 0.0
    %317 = vmatprep.subr.mxu0 0.0
    %318 = vmatpush1.msra.mxu0 0.0
    %319 = vmatprep.subr.mxu0 0.0
    %320 = vmatpush1.msra.mxu0 0.0
    %321 = vmatprep.subr.mxu0 0.0
    %322 = vmatpush1.msra.mxu0 0.0
    %323 = vmatprep.subr.mxu0 0.0
    %324 = vmatpush1.msra.mxu0 0.0
    %325 = vmatprep.subr.mxu0 0.0
    %326 = vmatpush1.msra.mxu0 0.0
    %327 = vmatprep.subr.mxu0 0.0
    %328 = vmatpush1.msra.mxu0 0.0
    %329 = vmatprep.subr.mxu0 0.0
    %330 = vmatpush1.msra.mxu0 0.0
    %331 = vmatprep.subr.mxu0 0.0
    %332 = vmatpush1.msra.mxu0 0.0
    %333 = vmatprep.subr.mxu0 0.0
    %334 = vmatpush1.msra.mxu0 0.0
    %335 = vmatprep.subr.mxu0 0.0
    %336 = vmatpush1.msra.mxu0 0.0
    %337 = vmatprep.subr.mxu0 0.0
    %338 = vmatpush1.msra.mxu0 0.0
    %339 = vmatprep.subr.mxu0 0.0
    %340 = vmatpush1.msra.mxu0 0.0
    %341 = vmatprep.subr.mxu0 0.0
    %342 = vmatpush1.msra.mxu0 0.0
    %343 = vmatprep.mubr.f32.mxu0 0.0
    %344 = vmatmul.mubr.f32.gmra.mrb[0].mxu0 %v63
    %v345 = vpop.f32.mrb[0].mxu0
    %v346 = vadd.f32 %v278, %v345
    %v347 = vpop.f32.mrb[0].mxu0
    %348 = vdwg.mxu0
    %349 = vst [vmem:[#allocation8] sm:$0xff] %v346
    %v350 = vlaneseq
    %v351 = vshrl.u32 %v350, 7
    %v352 = vsub.s32 0, %v351
    %v353 = vrot.slane %v274, %v352
    %354 = vmatprep.subr.mxu0 0.0
    %355 = vmatpush1.msra.mxu0 %v240
    %356 = vmatprep.subr.mxu0 0.0
    %357 = vmatpush1.msra.mxu0 %v241
    %358 = vmatprep.subr.mxu0 0.0
    %359 = vmatpush1.msra.mxu0 %v242
    %360 = vmatprep.subr.mxu0 0.0
    %361 = vmatpush1.msra.mxu0 %v243
    %362 = vmatprep.subr.mxu0 0.0
    %363 = vmatpush1.msra.mxu0 %v244
    %364 = vmatprep.subr.mxu0 0.0
    %365 = vmatpush1.msra.mxu0 %v245
    %366 = vmatprep.subr.mxu0 0.0
    %367 = vmatpush1.msra.mxu0 %v246
    %368 = vmatprep.subr.mxu0 0.0
    %369 = vmatpush1.msra.mxu0 %v247
    %370 = vmatprep.subr.mxu0 0.0
    %371 = vmatpush1.msra.mxu0 %v248
    %372 = vmatprep.subr.mxu0 0.0
    %373 = vmatpush1.msra.mxu0 %v249
    %374 = vmatprep.subr.mxu0 0.0
    %375 = vmatpush1.msra.mxu0 %v250
    %376 = vmatprep.subr.mxu0 0.0
    %377 = vmatpush1.msra.mxu0 %v251
    %378 = vmatprep.subr.mxu0 0.0
    %379 = vmatpush1.msra.mxu0 %v252
    %380 = vmatprep.subr.mxu0 0.0
    %381 = vmatpush1.msra.mxu0 %v253
    %382 = vmatprep.subr.mxu0 0.0
    %383 = vmatpush1.msra.mxu0 %v254
    %384 = vmatprep.subr.mxu0 0.0
    %385 = vmatpush1.msra.mxu0 %v255
    %386 = vmatprep.subr.mxu0 0.0
    %387 = vmatpush1.msra.mxu0 0.0
    %388 = vmatprep.subr.mxu0 0.0
    %389 = vmatpush1.msra.mxu0 0.0
    %390 = vmatprep.subr.mxu0 0.0
    %391 = vmatpush1.msra.mxu0 0.0
    %392 = vmatprep.subr.mxu0 0.0
    %393 = vmatpush1.msra.mxu0 0.0
    %394 = vmatprep.subr.mxu0 0.0
    %395 = vmatpush1.msra.mxu0 0.0
    %396 = vmatprep.subr.mxu0 0.0
    %397 = vmatpush1.msra.mxu0 0.0
    %398 = vmatprep.subr.mxu0 0.0
    %399 = vmatpush1.msra.mxu0 0.0
    %400 = vmatprep.subr.mxu0 0.0
    %401 = vmatpush1.msra.mxu0 0.0
    %402 = vmatprep.subr.mxu0 0.0
    %403 = vmatpush1.msra.mxu0 0.0
    %404 = vmatprep.subr.mxu0 0.0
    %405 = vmatpush1.msra.mxu0 0.0
    %406 = vmatprep.subr.mxu0 0.0
    %407 = vmatpush1.msra.mxu0 0.0
    %408 = vmatprep.subr.mxu0 0.0
    %409 = vmatpush1.msra.mxu0 0.0
    %410 = vmatprep.subr.mxu0 0.0
    %411 = vmatpush1.msra.mxu0 0.0
    %412 = vmatprep.subr.mxu0 0.0
    %413 = vmatpush1.msra.mxu0 0.0
    %414 = vmatprep.subr.mxu0 0.0
    %415 = vmatpush1.msra.mxu0 0.0
    %416 = vmatprep.subr.mxu0 0.0
    %417 = vmatpush1.msra.mxu0 0.0
    %418 = vmatprep.mubr.f32.mxu0 0.0
    %419 = vmatmul.mubr.f32.gmra.mrb[0].mxu0 %v63
    %v420 = vpop.f32.mrb[0].mxu0
    %v421 = vadd.f32 %v353, %v420
    %v422 = vpop.f32.mrb[0].mxu0
    %423 = vdwg.mxu0
    %424 = vst [vmem:[#allocation9] sm:$0xff] %v421
    // Predicated region
    $region34: #{fold_model.1} parent=1 // pred_check
      _
    $region35: #{fold_model.1} parent=1 // pred_check_branch
      %426 = sbr.rel (0) target = $region37
    $region36: #{fold_model.1} parent=1 // pred_region
      %s428 = ssub.s32 128, 128
      %429 = vsyncadd [#allocation4], %s428
      %s431 = sshll.u32 [#allocation8], 4
      %s432 = int_to_ptr.vmem [resolvable:$true] %s431
      %434 = dma.vmem_to_hbm [thread:$0]  %s432, 128, %s5, [#allocation4]
    $region37: #{fold_model.1} parent=1 // pred_fallthru
      _
    // Predicated region
    $region38: #{fold_model.1} parent=1 // pred_check
      _
    $region39: #{fold_model.1} parent=1 // pred_check_branch
      %436 = sbr.rel (0) target = $region41
    $region40: #{fold_model.1} parent=1 // pred_region
      %s438 = ssub.s32 128, 128
      %439 = vsyncadd [#allocation10], %s438
      %s441 = sshll.u32 [#allocation9], 4
      %s442 = int_to_ptr.vmem [resolvable:$true] %s441
      %444 = dma.vmem_to_hbm [thread:$0]  %s442, 128, %s6, [#allocation10]
    $region41: #{fold_model.1} parent=1 // pred_fallthru
      _
    // Predicated region
    $region42: #{fold_model.1} parent=1 // pred_check
      _
    $region43: #{fold_model.1} parent=1 // pred_check_branch
      %446 = sbr.rel (0) target = $region45
    $region44: #{fold_model.1} parent=1 // pred_region
      %447 = dma.done [#allocation4], 128
    $region45: #{fold_model.1} parent=1 // pred_fallthru
      _
    // Predicated region
    $region46: #{fold_model.1} parent=1 // pred_check
      _
    $region47: #{fold_model.1} parent=1 // pred_check_branch
      %449 = sbr.rel (0) target = $region49
    $region48: #{fold_model.1} parent=1 // pred_region
      %450 = dma.done [#allocation10], 128
    $region49: #{fold_model.1} parent=1 // pred_fallthru
      _
    %451 = vsyncpa [#allocation3], 1
    %452 = vsyncpa [#allocation6], 1
    %453 = vsyncpa [#allocation4], 1
    %454 = vsyncpa [#allocation10], 1

</llo_original>
